<compile_context>
chip_gen: v5e
topology: v5e:2x2
jax: 0.10.0
libtpu: 0.0.40
codegen_flags: <defaults>
</compile_context>

<pallas_src>
import functools
import math

import jax
import jax.numpy as jnp
from jax.experimental import pallas as pl
from jax.experimental.pallas import tpu as pltpu


def _add_margin_kernel(x_ref, w_ref, lab_ref, o_ref, *, s, m, eps, mm_dtype):
    c_tile = pl.program_id(0)

    x = x_ref[...].astype(jnp.float32)          # (B, D)
    w = w_ref[...].astype(jnp.float32)          # (TC, D)
    lab = lab_ref[...]                          # (B, 1) int32

    # F.normalize(v, dim=1): v / max(||v||, eps) == v * rsqrt(max(sum(v*v), eps^2))
    inv_x = jax.lax.rsqrt(
        jnp.maximum(jnp.sum(x * x, axis=-1, keepdims=True), eps * eps))
    inv_w = jax.lax.rsqrt(
        jnp.maximum(jnp.sum(w * w, axis=-1, keepdims=True), eps * eps))
    xn = x * (s * inv_x)                        # fold s -> matmul yields s*cosine
    wn = w * inv_w

    # NT matmul on the MXU: contract the shared last (lane) axis, no transpose.
    cos_s = jax.lax.dot_general(
        xn.astype(mm_dtype), wn.astype(mm_dtype),
        dimension_numbers=(((1,), (1,)), ((), ())),
        preferred_element_type=jnp.float32)     # (B, TC) == s * cosine

    # Subtract s*m only at the label column. Global class id = local + tile base.
    b, tc = cos_s.shape
    col = jax.lax.broadcasted_iota(jnp.int32, (b, tc), 1) + c_tile * tc
    out = cos_s - jnp.where(col == lab, jnp.float32(s * m), jnp.float32(0.0))
    o_ref[...] = out.astype(o_ref.dtype)


def add_margin_product(x, weight, label, *, s=30.0, m=0.4, eps=1e-12,
                       tc=None, mm_dtype=jnp.bfloat16, out_dtype=jnp.float32):
    """x: (B, D) f32, weight: (C, D) f32, label: (B,) int -> (B, C) out_dtype."""
    B, D = x.shape
    C, D2 = weight.shape
    assert D == D2
    lab2d = label.reshape(B, 1).astype(jnp.int32)

    # Class-tile size: lane-dense multiple of 128, kept <= 2048 so the
    # double-buffered W tile + output tile fit v7x's 64 MiB VMEM.
    if tc is None:
        for cand in (2048, 1024, 512, 256, 128):
            if C % cand == 0:
                tc = cand
                break
        else:
            tc = C  # small / awkward C: pad below (or single full-C tile)

    # Pad C up to a multiple of tc. Zero weight rows normalize to zero rows
    # (0 * rsqrt(eps^2) == 0), so padded columns are just 0 and sliced off.
    c_pad = pl.cdiv(C, tc) * tc
    if c_pad != C:
        weight = jnp.pad(weight, ((0, c_pad - C), (0, 0)))
    n_c = c_pad // tc

    # VMEM budget: double-buffered W tile + double-buffered output tile + x +
    # label, with headroom for in-kernel temporaries; clamp under v7x physical.
    blk_bytes = (2 * tc * D * weight.dtype.itemsize
                 + 2 * B * tc * jnp.dtype(out_dtype).itemsize
                 + 2 * B * D * x.dtype.itemsize
                 + 2 * B * 4)
    vmem_limit = int(min(max(4 * blk_bytes, 32 * 1024 * 1024), 48 * 1024 * 1024))

    kernel = functools.partial(
        _add_margin_kernel,
        s=float(s), m=float(m), eps=float(eps), mm_dtype=mm_dtype)

    out = pl.pallas_call(
        kernel,
        out_shape=jax.ShapeDtypeStruct((B, c_pad), out_dtype),
        grid=(n_c,),
        in_specs=[
            pl.BlockSpec((B, D), lambda c: (0, 0)),   # x: broadcast across C-tiles
            pl.BlockSpec((tc, D), lambda c: (c, 0)),  # W: one class tile per step
            pl.BlockSpec((B, 1), lambda c: (0, 0)),   # label: broadcast
        ],
        out_specs=pl.BlockSpec((B, tc), lambda c: (0, c)),
        compiler_params=pltpu.CompilerParams(
            dimension_semantics=("parallel",),
            vmem_limit_bytes=vmem_limit),
    )(x, weight, lab2d)

    # TODO(synk): if B grows very large, add a B grid axis *inside* the C axis
    # (C outer) so each W tile is fetched/normalized once.
    return out[:, :C] if c_pad != C else out


def _reference(x, weight, label, s=30.0, m=0.4, eps=1e-12):
    xn = x / jnp.maximum(jnp.linalg.norm(x, axis=1, keepdims=True), eps)
    wn = weight / jnp.maximum(jnp.linalg.norm(weight, axis=1, keepdims=True), eps)
    cosine = jnp.matmul(xn, wn.T, precision=jax.lax.Precision.HIGHEST)
    one_hot = jax.nn.one_hot(label, weight.shape[0], dtype=jnp.float32)
    return s * (one_hot * (cosine - m) + (1.0 - one_hot) * cosine)


if __name__ == "__main__":
    # Small shapes consistent with the module; D a lane multiple, C tiled 4x.
    B, D, C = 8, 128, 512
    key = jax.random.PRNGKey(0)
    kx, kw, kl = jax.random.split(key, 3)

    x = jax.random.normal(kx, (B, D), dtype=jnp.float32)

    # xavier_uniform_ on weight of shape (out_features, in_features)
    bound = math.sqrt(6.0 / (C + D))
    weight = jax.random.uniform(kw, (C, D), jnp.float32, -bound, bound)

    label = jax.random.randint(kl, (B,), 0, C, dtype=jnp.int32)

    out = add_margin_product(x, weight, label, s=30.0, m=0.4, tc=128)  # 4 C-tiles
    out = jax.block_until_ready(out)

    ref = _reference(x, weight, label, s=30.0, m=0.4)
    assert out.shape == (B, C)
    # bf16 MXU operands bound the cosine error by ~2*2^-8, i.e. ~0.23 after the
    # s=30 scale; the margin term s*m = 12 >> tol, so this also verifies the
    # margin lands on the correct (global) class column in every C-tile.
    assert jnp.allclose(out, ref, atol=3e-1, rtol=0.0), "mismatch vs reference"

    print("KERNEL_OK")
</pallas_src>

<mosaic_0001>
module attributes {stable_mosaic.version = 11 : i64} {
  func.func @_add_margin_kernel(%arg0: i32, %arg1: memref<8x128xf32, #tpu.memory_space<vmem>>, %arg2: memref<128x128xf32, #tpu.memory_space<vmem>>, %arg3: memref<8x1xi32, #tpu.memory_space<vmem>>, %arg4: memref<8x128xf32, #tpu.memory_space<vmem>>) attributes {dimension_semantics = [#tpu.dimension_semantics<parallel>], iteration_bounds = array<i64: 4>, scalar_prefetch = 0 : i64, scratch_operands = 0 : i64, tpu.core_type = #tpu.core_type<tc>, window_params = [{pipeline_mode = #tpu.pipeline_mode<synchronous>, transform_indices = @transform_0, window_bounds = array<i64: 8, 128>}, {transform_indices = @transform_1, window_bounds = array<i64: 128, 128>}, {pipeline_mode = #tpu.pipeline_mode<synchronous>, transform_indices = @transform_2, window_bounds = array<i64: 8, 1>}, {transform_indices = @transform_3, window_bounds = array<i64: 8, 128>}]} {
    %c0 = arith.constant 0 : index
    %c0_0 = arith.constant 0 : index
    %0 = vector.load %arg1[%c0, %c0_0] : memref<8x128xf32, #tpu.memory_space<vmem>>, vector<8x128xf32>
    %c0_1 = arith.constant 0 : index
    %c0_2 = arith.constant 0 : index
    %1 = vector.load %arg2[%c0_1, %c0_2] : memref<128x128xf32, #tpu.memory_space<vmem>>, vector<128x128xf32>
    %c0_3 = arith.constant 0 : index
    %c0_4 = arith.constant 0 : index
    %2 = vector.load %arg3[%c0_3, %c0_4] : memref<8x1xi32, #tpu.memory_space<vmem>>, vector<8x1xi32>
    %3 = arith.mulf %0, %0 : vector<8x128xf32>
    %cst = arith.constant dense<0.000000e+00> : vector<8xf32>
    %4 = vector.multi_reduction <add>, %3, %cst [1] : vector<8x128xf32> to vector<8xf32>
    %5 = vector.shape_cast %4 : vector<8xf32> to vector<8x1xf32>
    %cst_5 = arith.constant 1.000000e-24 : f32
    %6 = vector.broadcast %cst_5 : f32 to vector<8x1xf32>
    %7 = arith.maximumf %5, %6 : vector<8x1xf32>
    %8 = math.rsqrt %7 : vector<8x1xf32>
    %9 = arith.mulf %1, %1 : vector<128x128xf32>
    %cst_6 = arith.constant dense<0.000000e+00> : vector<128xf32>
    %10 = vector.multi_reduction <add>, %9, %cst_6 [1] : vector<128x128xf32> to vector<128xf32>
    %11 = vector.shape_cast %10 : vector<128xf32> to vector<128x1xf32>
    %cst_7 = arith.constant 1.000000e-24 : f32
    %12 = vector.broadcast %cst_7 : f32 to vector<128x1xf32>
    %13 = arith.maximumf %11, %12 : vector<128x1xf32>
    %14 = math.rsqrt %13 : vector<128x1xf32>
    %cst_8 = arith.constant 3.000000e+01 : f32
    %15 = vector.broadcast %cst_8 : f32 to vector<8x1xf32>
    %16 = arith.mulf %15, %8 : vector<8x1xf32>
    %17 = vector.broadcast %16 : vector<8x1xf32> to vector<8x128xf32>
    %18 = arith.mulf %0, %17 : vector<8x128xf32>
    %19 = vector.broadcast %14 : vector<128x1xf32> to vector<128x128xf32>
    %20 = arith.mulf %1, %19 : vector<128x128xf32>
    %21 = arith.truncf %18 : vector<8x128xf32> to vector<8x128xbf16>
    %22 = arith.truncf %20 : vector<128x128xf32> to vector<128x128xbf16>
    %cst_9 = arith.constant dense<0.000000e+00> : vector<8x128xf32>
    %23 = tpu.matmul %21, %22, %cst_9 {dimension_numbers = #tpu.dot_dimension_numbers<[1], [1], [0], [0], [0, 0, 1, 0], [], []>} : vector<8x128xbf16>, vector<128x128xbf16>, vector<8x128xf32> -> vector<8x128xf32>
    %24 = tpu.iota {dimensions = array<i32: 1>} : vector<8x128xi32>
    %c128_i32 = arith.constant 128 : i32
    %25 = arith.muli %arg0, %c128_i32 : i32
    %26 = vector.broadcast %25 : i32 to vector<8x128xi32>
    %27 = arith.addi %24, %26 : vector<8x128xi32>
    %28 = vector.broadcast %2 : vector<8x1xi32> to vector<8x128xi32>
    %29 = arith.cmpi eq, %27, %28 : vector<8x128xi32>
    %cst_10 = arith.constant 1.200000e+01 : f32
    %cst_11 = arith.constant 0.000000e+00 : f32
    %30 = vector.broadcast %cst_10 : f32 to vector<8x128xf32>
    %31 = vector.broadcast %cst_11 : f32 to vector<8x128xf32>
    %32 = arith.select %29, %30, %31 : vector<8x128xi1>, vector<8x128xf32>
    %33 = arith.subf %23, %32 : vector<8x128xf32>
    %c0_12 = arith.constant 0 : index
    %c0_13 = arith.constant 0 : index
    %34 = vector.load %arg4[%c0_12, %c0_13] : memref<8x128xf32, #tpu.memory_space<vmem>>, vector<8x128xf32>
    tpu.vector_store %arg4[%c0_12, %c0_13], %33 {strides = array<i32>} : memref<8x128xf32, #tpu.memory_space<vmem>>, vector<8x128xf32>,
    return
  }
  func.func @transform_0(%arg0: i32) -> (i32, i32) {
    %c0_i32 = arith.constant 0 : i32
    %c0_i32_0 = arith.constant 0 : i32
    %c0_i32_1 = arith.constant 0 : i32
    return %c0_i32, %c0_i32_0 : i32, i32
  }
  func.func @transform_1(%arg0: i32) -> (i32, i32) {
    %c0_i32 = arith.constant 0 : i32
    %c0_i32_0 = arith.constant 0 : i32
    return %arg0, %c0_i32 : i32, i32
  }
  func.func @transform_2(%arg0: i32) -> (i32, i32) {
    %c0_i32 = arith.constant 0 : i32
    %c0_i32_0 = arith.constant 0 : i32
    %c0_i32_1 = arith.constant 0 : i32
    return %c0_i32, %c0_i32_0 : i32, i32
  }
  func.func @transform_3(%arg0: i32) -> (i32, i32) {
    %c0_i32 = arith.constant 0 : i32
    %c0_i32_0 = arith.constant 0 : i32
    return %c0_i32, %arg0 : i32, i32
  }
}

</mosaic_0001>

<llo_original>
// kernel: tpu_custom_call.1
$region0: #{tpu_custom_call.1}
  #allocation0 [shape = 'u32[]', space=smem, size = 0x4, offset = 0x4, fixed_abs, tag = 'smem constant byte address 0x4 - core index']
  #allocation1 [shape = 'u32[72,128]{1,0:T(1,128)}', space=vmem, size = 0x9000, scoped, tag = 'internal scratch']
  %s0 = inlined_call_operand.vmem [shape: f32[8,128], index: 0, kind: input, shape index: {}]
  %s1 = inlined_call_operand.hbm [shape: f32[512,128], index: 1, kind: input, shape index: {}]
  %s2 = inlined_call_operand.vmem [shape: s32[8,1], index: 2, kind: input, shape index: {}]
  %s3 = inlined_call_operand.hbm [shape: f32[8,512], index: 3, kind: output, shape index: {}]
  %s4 = sld [smem:[#allocation0]]
  $region49: #{tpu_custom_call.1} parent=0
    _
  %s6 = ssub.s32 1, %s4
  %s7 = scalar_select 0, %s6, %s4
  $region1: #{tpu_custom_call.1} parent=0
    #allocation2 [shape = 'u8[131072]{0}', space=vmem, size = 0x20000, scoped, tag = 'input window, operand 1']
    #allocation3 [shape = 's32[2]{0}', space=sflag, size = 0x8, scoped, tag = 'scoped memory for tpu_custom_call.1']
    #allocation4 [shape = 's32[2]{0}', space=sflag, size = 0x8, scoped, tag = 'scoped memory for tpu_custom_call.1']
    #allocation5 [shape = 'u8[8192]{0}', space=vmem, size = 0x2000, scoped, tag = 'output window, operand 0']
    %8 = vsyncpa [#allocation3], 0
    %s9 = scalar_lea.sflag [#allocation3], 1
    %10 = vsyncpa %s9, 0
    %11 = vsyncpa [#allocation4], 0
    %s12 = scalar_lea.sflag [#allocation4], 1
    %13 = vsyncpa %s12, 0
    loop: start=0, step=1, limit=6
    $region2: #{tpu_custom_call.1} parent=1 // loop_pre_header
      _
    $region3: #{tpu_custom_call.1} parent=1 // loop_header
      %s15 = sphi 0, %s19
      %p16 = scmp.ge.s32.totalorder %s15, 6
      %s23 = sphi 0, %s23
      %s25 = sphi 0, %s23
      %s26 = sphi 0, %s25
      %s40 = sphi 0, %s26
      %s46 = sphi 0, %s48
      %s49 = sphi 0, %s46
      %s50 = sphi 0, %s49
      %s66 = sphi 0, %s50
      %s70 = sphi 0, %s70
      %s72 = sphi 0, %s70
      %s73 = sphi 0, %s72
      %s87 = sphi 0, %s73
      %s93 = sphi 0, %s95
      %s96 = sphi 0, %s93
      %s97 = sphi 0, %s96
      %s113 = sphi 0, %s97
    $region4: #{tpu_custom_call.1} parent=1 // loop_header_branch
      %18 = sbr.rel (%p16) target = $region8
    $region5: #{tpu_custom_call.1} parent=1 // loop_body
      %s20 = ssub.s32 %s15, 1
      %s21 = ssub.s32 %s15, 2
      %s22 = sadd.s32 %s15, 1
      %s24 = sadd.s32 %s23, 1
      %p27 = scmp.eq.s32.totalorder %s15, 3
      %p28 = scmp.ne.s32.totalorder %s23, %s25
      %p29 = scmp.eq.s32.totalorder %s15, 0
      %p30 = por %p28, %p29
      %p31 = scmp.ne.s32.totalorder %s23, %s25
      %p32 = scmp.eq.s32.totalorder %s20, 3
      %p33 = por %p31, %p32
      %p34 = scmp.ne.s32.totalorder %s25, %s26
      %p35 = scmp.eq.s32.totalorder %s20, 0
      %p36 = por %p34, %p35
      %p37 = scmp.ne.s32.totalorder %s25, %s26
      %p38 = scmp.eq.s32.totalorder %s21, 3
      %p39 = por %p37, %p38
      %p41 = scmp.ne.s32.totalorder %s26, %s40
      %p42 = scmp.eq.s32.totalorder %s21, 0
      %p43 = por %p41, %p42
      %s44 = ssub.s32 %s15, %s22
      %p45 = scmp.eq.s32.totalorder %s44, 0
      %s47 = sadd.s32 %s46, 1
      %s48 = scalar_select %p45, %s46, %s47
      %p51 = pneg %p45
      %p52 = scmp.eq.s32.totalorder %s15, 3
      %p53 = por %p51, %p52
      %p54 = scmp.ne.s32.totalorder %s46, %s49
      %p55 = scmp.eq.s32.totalorder %s15, 0
      %p56 = por %p54, %p55
      %p57 = scmp.ne.s32.totalorder %s46, %s49
      %p58 = scmp.eq.s32.totalorder %s20, 3
      %p59 = por %p57, %p58
      %p60 = scmp.ne.s32.totalorder %s49, %s50
      %p61 = scmp.eq.s32.totalorder %s20, 0
      %p62 = por %p60, %p61
      %p63 = scmp.ne.s32.totalorder %s49, %s50
      %p64 = scmp.eq.s32.totalorder %s21, 3
      %p65 = por %p63, %p64
      %p67 = scmp.ne.s32.totalorder %s50, %s66
      %p68 = scmp.eq.s32.totalorder %s21, 0
      %p69 = por %p67, %p68
      %s71 = sadd.s32 %s70, 1
      %p74 = scmp.eq.s32.totalorder %s15, 3
      %p75 = scmp.ne.s32.totalorder %s70, %s72
      %p76 = scmp.eq.s32.totalorder %s15, 0
      %p77 = por %p75, %p76
      %p78 = scmp.ne.s32.totalorder %s70, %s72
      %p79 = scmp.eq.s32.totalorder %s20, 3
      %p80 = por %p78, %p79
      %p81 = scmp.ne.s32.totalorder %s72, %s73
      %p82 = scmp.eq.s32.totalorder %s20, 0
      %p83 = por %p81, %p82
      %p84 = scmp.ne.s32.totalorder %s72, %s73
      %p85 = scmp.eq.s32.totalorder %s21, 3
      %p86 = por %p84, %p85
      %p88 = scmp.ne.s32.totalorder %s73, %s87
      %p89 = scmp.eq.s32.totalorder %s21, 0
      %p90 = por %p88, %p89
      %s91 = ssub.s32 %s15, %s22
      %p92 = scmp.eq.s32.totalorder %s91, 0
      %s94 = sadd.s32 %s93, 1
      %s95 = scalar_select %p92, %s93, %s94
      %p98 = pneg %p92
      %p99 = scmp.eq.s32.totalorder %s15, 3
      %p100 = por %p98, %p99
      %p101 = scmp.ne.s32.totalorder %s93, %s96
      %p102 = scmp.eq.s32.totalorder %s15, 0
      %p103 = por %p101, %p102
      %p104 = scmp.ne.s32.totalorder %s93, %s96
      %p105 = scmp.eq.s32.totalorder %s20, 3
      %p106 = por %p104, %p105
      %p107 = scmp.ne.s32.totalorder %s96, %s97
      %p108 = scmp.eq.s32.totalorder %s20, 0
      %p109 = por %p107, %p108
      %p110 = scmp.ne.s32.totalorder %s96, %s97
      %p111 = scmp.eq.s32.totalorder %s21, 3
      %p112 = por %p110, %p111
      %p114 = scmp.ne.s32.totalorder %s97, %s113
      %p115 = scmp.eq.s32.totalorder %s21, 0
      %p116 = por %p114, %p115
      %p117 = scmp.le.s32.totalorder 1, %s15
      %p118 = scmp.lt.s32.totalorder %s15, 5
      %p119 = pnand %p117, %p118
      %p120 = pneg %p119
      // Predicated region
      $region9: #{tpu_custom_call.1} parent=5 // pred_check
        _
      $region10: #{tpu_custom_call.1} parent=5 // pred_check_branch
        %122 = sbr.rel (%p119) target = $region12
      $region11: #{tpu_custom_call.1} parent=5 // pred_region
        %s123 = ssub.s32 %s15, 1
        // Predicated region
        $region13: #{tpu_custom_call.1} parent=11 // pred_check
          %p124 = pneg %p36
        $region14: #{tpu_custom_call.1} parent=11 // pred_check_branch
          %126 = sbr.rel (%p124) target = $region16
        $region15: #{tpu_custom_call.1} parent=11 // pred_region
          _
        $region16: #{tpu_custom_call.1} parent=11 // pred_fallthru
          _
        // Predicated region
        $region17: #{tpu_custom_call.1} parent=11 // pred_check
          %p127 = pneg %p83
        $region18: #{tpu_custom_call.1} parent=11 // pred_check_branch
          %129 = sbr.rel (%p127) target = $region20
        $region19: #{tpu_custom_call.1} parent=11 // pred_region
          _
        $region20: #{tpu_custom_call.1} parent=11 // pred_fallthru
          _
      $region12: #{tpu_custom_call.1} parent=5 // pred_fallthru
        _
      %p130 = scmp.lt.s32.totalorder %s15, 4
      // Predicated region
      $region21: #{tpu_custom_call.1} parent=5 // pred_check
        %p131 = pneg %p130
      $region22: #{tpu_custom_call.1} parent=5 // pred_check_branch
        %133 = sbr.rel (%p131) target = $region24
      $region23: #{tpu_custom_call.1} parent=5 // pred_region
        // Predicated region
        $region25: #{tpu_custom_call.1} parent=23 // pred_check
          %p134 = pneg %p56
        $region26: #{tpu_custom_call.1} parent=23 // pred_check_branch
          %136 = sbr.rel (%p134) target = $region28
        $region27: #{tpu_custom_call.1} parent=23 // pred_region
          %s137 = sand.u32 %s46, 1
          %s138 = scalar_lea.sflag [#allocation3], %s137
          %s139 = sand.u32 %s46, 1
          %s140 = smul.addr %s139, 128
          %s141 = scalar_lea.vmem [#allocation2], %s140
          %s142 = smul.u32 16, %s15
          %144 = vsyncadd %s138, 0
          %s145 = smul.addr %s142, 8
          %s146 = scalar_lea.hbm %s1, %s145
          %s147 = sshll.u32 %s146, 4
          %s148 = int_to_ptr.hbm [resolvable:$true] %s147
          %s149 = sshll.u32 %s141, 4
          %s150 = int_to_ptr.vmem [resolvable:$true] %s149
          %155 = dma.hbm_to_vmem [thread:$0]  %s148, 2048, %s150, %s138, 128, 128, 8
        $region28: #{tpu_custom_call.1} parent=23 // pred_fallthru
          _
      $region24: #{tpu_custom_call.1} parent=5 // pred_fallthru
        _
      %p156 = scmp.le.s32.totalorder 1, %s15
      %p157 = scmp.lt.s32.totalorder %s15, 5
      %p158 = pnand %p156, %p157
      %p159 = pneg %p158
      // Predicated region
      $region29: #{tpu_custom_call.1} parent=5 // pred_check
        _
      $region30: #{tpu_custom_call.1} parent=5 // pred_check_branch
        %161 = sbr.rel (%p158) target = $region32
      $region31: #{tpu_custom_call.1} parent=5 // pred_region
        %s162 = ssub.s32 %s15, 1
        %s163 = sand.u32 %s49, 1
        %s164 = scalar_lea.sflag [#allocation3], %s163
        %s165 = sand.u32 %s49, 1
        %s166 = smul.addr %s165, 128
        %s167 = scalar_lea.vmem [#allocation2], %s166
        // Predicated region
        $region33: #{tpu_custom_call.1} parent=31 // pred_check
          %p168 = pneg %p62
        $region34: #{tpu_custom_call.1} parent=31 // pred_check_branch
          %170 = sbr.rel (%p168) target = $region36
        $region35: #{tpu_custom_call.1} parent=31 // pred_region
          %172 = dma.done %s164, 2048
        $region36: #{tpu_custom_call.1} parent=31 // pred_fallthru
          _
        %p173 = pneg %p36
        %p174 = pneg %p33
        %s175 = sand.u32 %s49, 1
        %s176 = scalar_lea.sflag [#allocation3], %s175
        %s177 = sand.u32 %s49, 1
        %s178 = smul.addr %s177, 128
        %s179 = scalar_lea.vmem [#allocation2], %s178
        %p180 = pneg %p62
        %p181 = pneg %p59
        %p182 = pneg %p83
        %p183 = pneg %p80
        %p184 = pneg %p109
        %p185 = pneg %p106
        %s186 = sand.u32 %s96, 1
        %s187 = scalar_lea.sflag [#allocation4], %s186
        %s188 = sand.u32 %s96, 1
        %s189 = smul.addr %s188, 8
        %s190 = scalar_lea.vmem [#allocation5], %s189
        %s191 = smul.u32 16, %s20
        %v192 = vld [vmem:[%s0] sm:$0xff]
        %v193 = vld [vmem:[%s167] sm:$0xff]
        %v194 = vld [vmem:[%s167 + $0x8] sm:$0xff]
        %v195 = vld [vmem:[%s167 + $0x10] sm:$0xff]
        %v196 = vld [vmem:[%s167 + $0x18] sm:$0xff]
        %v197 = vld [vmem:[%s167 + $0x20] sm:$0xff]
        %v198 = vld [vmem:[%s167 + $0x28] sm:$0xff]
        %v199 = vld [vmem:[%s167 + $0x30] sm:$0xff]
        %v200 = vld [vmem:[%s167 + $0x38] sm:$0xff]
        %v201 = vld [vmem:[%s167 + $0x40] sm:$0xff]
        %v202 = vld [vmem:[%s167 + $0x48] sm:$0xff]
        %v203 = vld [vmem:[%s167 + $0x50] sm:$0xff]
        %v204 = vld [vmem:[%s167 + $0x58] sm:$0xff]
        %v205 = vld [vmem:[%s167 + $0x60] sm:$0xff]
        %v206 = vld [vmem:[%s167 + $0x68] sm:$0xff]
        %v207 = vld [vmem:[%s167 + $0x70] sm:$0xff]
        %v208 = vld [vmem:[%s167 + $0x78] sm:$0xff]
        %v209 = vld [vmem:[%s2] sm:$0xff]
        %v210 = vmul.f32 %v192, %v192
        %211 = vadd.xlane.f32.xlu0 %v210
        %v212 = vpop.xlane.xlu0 %211
        %v213 = vmax.f32 %v212, 1e-24
        %v214 = vrsqrt.pop %v213
        %v215 = vmul.f32 %v214, %v213
        %v216 = vmul.f32 %v215, %v214
        %v217 = vmul.f32 0.5, %v216
        %v218 = vsub.f32 1.5, %v217
        %v219 = vmul.f32 %v214, %v218
        %vm220 = vweird.f32 %v213
        %vm221 = vweird.f32 %v214
        %vm222 = vmor %vm220, %vm221
        %v223 = vsel %vm222, %v214, %v219
        %v224 = vmul.f32 %v193, %v193
        %v225 = vmul.f32 %v194, %v194
        %v226 = vmul.f32 %v195, %v195
        %v227 = vmul.f32 %v196, %v196
        %v228 = vmul.f32 %v197, %v197
        %v229 = vmul.f32 %v198, %v198
        %v230 = vmul.f32 %v199, %v199
        %v231 = vmul.f32 %v200, %v200
        %v232 = vmul.f32 %v201, %v201
        %v233 = vmul.f32 %v202, %v202
        %v234 = vmul.f32 %v203, %v203
        %v235 = vmul.f32 %v204, %v204
        %v236 = vmul.f32 %v205, %v205
        %v237 = vmul.f32 %v206, %v206
        %v238 = vmul.f32 %v207, %v207
        %v239 = vmul.f32 %v208, %v208
        %240 = vadd.xlane.f32.xlu0 %v224
        %v241 = vpop.xlane.xlu0 %240
        %242 = vadd.xlane.f32.xlu0 %v225
        %v243 = vpop.xlane.xlu0 %242
        %244 = vadd.xlane.f32.xlu0 %v226
        %v245 = vpop.xlane.xlu0 %244
        %246 = vadd.xlane.f32.xlu0 %v227
        %v247 = vpop.xlane.xlu0 %246
        %248 = vadd.xlane.f32.xlu0 %v228
        %v249 = vpop.xlane.xlu0 %248
        %250 = vadd.xlane.f32.xlu0 %v229
        %v251 = vpop.xlane.xlu0 %250
        %252 = vadd.xlane.f32.xlu0 %v230
        %v253 = vpop.xlane.xlu0 %252
        %254 = vadd.xlane.f32.xlu0 %v231
        %v255 = vpop.xlane.xlu0 %254
        %256 = vadd.xlane.f32.xlu0 %v232
        %v257 = vpop.xlane.xlu0 %256
        %258 = vadd.xlane.f32.xlu0 %v233
        %v259 = vpop.xlane.xlu0 %258
        %260 = vadd.xlane.f32.xlu0 %v234
        %v261 = vpop.xlane.xlu0 %260
        %262 = vadd.xlane.f32.xlu0 %v235
        %v263 = vpop.xlane.xlu0 %262
        %264 = vadd.xlane.f32.xlu0 %v236
        %v265 = vpop.xlane.xlu0 %264
        %266 = vadd.xlane.f32.xlu0 %v237
        %v267 = vpop.xlane.xlu0 %266
        %268 = vadd.xlane.f32.xlu0 %v238
        %v269 = vpop.xlane.xlu0 %268
        %270 = vadd.xlane.f32.xlu0 %v239
        %v271 = vpop.xlane.xlu0 %270
        %v272 = vmax.f32 %v241, 1e-24
        %v273 = vmax.f32 %v243, 1e-24
        %v274 = vmax.f32 %v245, 1e-24
        %v275 = vmax.f32 %v247, 1e-24
        %v276 = vmax.f32 %v249, 1e-24
        %v277 = vmax.f32 %v251, 1e-24
        %v278 = vmax.f32 %v253, 1e-24
        %v279 = vmax.f32 %v255, 1e-24
        %v280 = vmax.f32 %v257, 1e-24
        %v281 = vmax.f32 %v259, 1e-24
        %v282 = vmax.f32 %v261, 1e-24
        %v283 = vmax.f32 %v263, 1e-24
        %v284 = vmax.f32 %v265, 1e-24
        %v285 = vmax.f32 %v267, 1e-24
        %v286 = vmax.f32 %v269, 1e-24
        %v287 = vmax.f32 %v271, 1e-24
        %v288 = vrsqrt.pop %v272
        %v289 = vmul.f32 %v288, %v272
        %v290 = vmul.f32 %v289, %v288
        %v291 = vmul.f32 0.5, %v290
        %v292 = vsub.f32 1.5, %v291
        %v293 = vmul.f32 %v288, %v292
        %vm294 = vweird.f32 %v272
        %vm295 = vweird.f32 %v288
        %vm296 = vmor %vm294, %vm295
        %v297 = vsel %vm296, %v288, %v293
        %v298 = vrsqrt.pop %v273
        %v299 = vmul.f32 %v298, %v273
        %v300 = vmul.f32 %v299, %v298
        %v301 = vmul.f32 0.5, %v300
        %v302 = vsub.f32 1.5, %v301
        %v303 = vmul.f32 %v298, %v302
        %vm304 = vweird.f32 %v273
        %vm305 = vweird.f32 %v298
        %vm306 = vmor %vm304, %vm305
        %v307 = vsel %vm306, %v298, %v303
        %v308 = vrsqrt.pop %v274
        %v309 = vmul.f32 %v308, %v274
        %v310 = vmul.f32 %v309, %v308
        %v311 = vmul.f32 0.5, %v310
        %v312 = vsub.f32 1.5, %v311
        %v313 = vmul.f32 %v308, %v312
        %vm314 = vweird.f32 %v274
        %vm315 = vweird.f32 %v308
        %vm316 = vmor %vm314, %vm315
        %v317 = vsel %vm316, %v308, %v313
        %v318 = vrsqrt.pop %v275
        %v319 = vmul.f32 %v318, %v275
        %v320 = vmul.f32 %v319, %v318
        %v321 = vmul.f32 0.5, %v320
        %v322 = vsub.f32 1.5, %v321
        %v323 = vmul.f32 %v318, %v322
        %vm324 = vweird.f32 %v275
        %vm325 = vweird.f32 %v318
        %vm326 = vmor %vm324, %vm325
        %v327 = vsel %vm326, %v318, %v323
        %v328 = vrsqrt.pop %v276
        %v329 = vmul.f32 %v328, %v276
        %v330 = vmul.f32 %v329, %v328
        %v331 = vmul.f32 0.5, %v330
        %v332 = vsub.f32 1.5, %v331
        %v333 = vmul.f32 %v328, %v332
        %vm334 = vweird.f32 %v276
        %vm335 = vweird.f32 %v328
        %vm336 = vmor %vm334, %vm335
        %v337 = vsel %vm336, %v328, %v333
        %v338 = vrsqrt.pop %v277
        %v339 = vmul.f32 %v338, %v277
        %v340 = vmul.f32 %v339, %v338
        %v341 = vmul.f32 0.5, %v340
        %v342 = vsub.f32 1.5, %v341
        %v343 = vmul.f32 %v338, %v342
        %vm344 = vweird.f32 %v277
        %vm345 = vweird.f32 %v338
        %vm346 = vmor %vm344, %vm345
        %v347 = vsel %vm346, %v338, %v343
        %v348 = vrsqrt.pop %v278
        %v349 = vmul.f32 %v348, %v278
        %v350 = vmul.f32 %v349, %v348
        %v351 = vmul.f32 0.5, %v350
        %v352 = vsub.f32 1.5, %v351
        %v353 = vmul.f32 %v348, %v352
        %vm354 = vweird.f32 %v278
        %vm355 = vweird.f32 %v348
        %vm356 = vmor %vm354, %vm355
        %v357 = vsel %vm356, %v348, %v353
        %v358 = vrsqrt.pop %v279
        %v359 = vmul.f32 %v358, %v279
        %v360 = vmul.f32 %v359, %v358
        %v361 = vmul.f32 0.5, %v360
        %v362 = vsub.f32 1.5, %v361
        %v363 = vmul.f32 %v358, %v362
        %vm364 = vweird.f32 %v279
        %vm365 = vweird.f32 %v358
        %vm366 = vmor %vm364, %vm365
        %v367 = vsel %vm366, %v358, %v363
        %v368 = vrsqrt.pop %v280
        %v369 = vmul.f32 %v368, %v280
        %v370 = vmul.f32 %v369, %v368
        %v371 = vmul.f32 0.5, %v370
        %v372 = vsub.f32 1.5, %v371
        %v373 = vmul.f32 %v368, %v372
        %vm374 = vweird.f32 %v280
        %vm375 = vweird.f32 %v368
        %vm376 = vmor %vm374, %vm375
        %v377 = vsel %vm376, %v368, %v373
        %v378 = vrsqrt.pop %v281
        %v379 = vmul.f32 %v378, %v281
        %v380 = vmul.f32 %v379, %v378
        %v381 = vmul.f32 0.5, %v380
        %v382 = vsub.f32 1.5, %v381
        %v383 = vmul.f32 %v378, %v382
        %vm384 = vweird.f32 %v281
        %vm385 = vweird.f32 %v378
        %vm386 = vmor %vm384, %vm385
        %v387 = vsel %vm386, %v378, %v383
        %v388 = vrsqrt.pop %v282
        %v389 = vmul.f32 %v388, %v282
        %v390 = vmul.f32 %v389, %v388
        %v391 = vmul.f32 0.5, %v390
        %v392 = vsub.f32 1.5, %v391
        %v393 = vmul.f32 %v388, %v392
        %vm394 = vweird.f32 %v282
        %vm395 = vweird.f32 %v388
        %vm396 = vmor %vm394, %vm395
        %v397 = vsel %vm396, %v388, %v393
        %v398 = vrsqrt.pop %v283
        %v399 = vmul.f32 %v398, %v283
        %v400 = vmul.f32 %v399, %v398
        %v401 = vmul.f32 0.5, %v400
        %v402 = vsub.f32 1.5, %v401
        %v403 = vmul.f32 %v398, %v402
        %vm404 = vweird.f32 %v283
        %vm405 = vweird.f32 %v398
        %vm406 = vmor %vm404, %vm405
        %v407 = vsel %vm406, %v398, %v403
        %v408 = vrsqrt.pop %v284
        %v409 = vmul.f32 %v408, %v284
        %v410 = vmul.f32 %v409, %v408
        %v411 = vmul.f32 0.5, %v410
        %v412 = vsub.f32 1.5, %v411
        %v413 = vmul.f32 %v408, %v412
        %vm414 = vweird.f32 %v284
        %vm415 = vweird.f32 %v408
        %vm416 = vmor %vm414, %vm415
        %v417 = vsel %vm416, %v408, %v413
        %v418 = vrsqrt.pop %v285
        %v419 = vmul.f32 %v418, %v285
        %v420 = vmul.f32 %v419, %v418
        %v421 = vmul.f32 0.5, %v420
        %v422 = vsub.f32 1.5, %v421
        %v423 = vmul.f32 %v418, %v422
        %vm424 = vweird.f32 %v285
        %vm425 = vweird.f32 %v418
        %vm426 = vmor %vm424, %vm425
        %v427 = vsel %vm426, %v418, %v423
        %v428 = vrsqrt.pop %v286
        %v429 = vmul.f32 %v428, %v286
        %v430 = vmul.f32 %v429, %v428
        %v431 = vmul.f32 0.5, %v430
        %v432 = vsub.f32 1.5, %v431
        %v433 = vmul.f32 %v428, %v432
        %vm434 = vweird.f32 %v286
        %vm435 = vweird.f32 %v428
        %vm436 = vmor %vm434, %vm435
        %v437 = vsel %vm436, %v428, %v433
        %v438 = vrsqrt.pop %v287
        %v439 = vmul.f32 %v438, %v287
        %v440 = vmul.f32 %v439, %v438
        %v441 = vmul.f32 0.5, %v440
        %v442 = vsub.f32 1.5, %v441
        %v443 = vmul.f32 %v438, %v442
        %vm444 = vweird.f32 %v287
        %vm445 = vweird.f32 %v438
        %vm446 = vmor %vm444, %vm445
        %v447 = vsel %vm446, %v438, %v443
        %v448 = vmul.f32 %v223, 30.0
        %v449 = vmul.f32 %v192, %v448
        %v450 = vmul.f32 %v193, %v297
        %v451 = vmul.f32 %v194, %v307
        %v452 = vmul.f32 %v195, %v317
        %v453 = vmul.f32 %v196, %v327
        %v454 = vmul.f32 %v197, %v337
        %v455 = vmul.f32 %v198, %v347
        %v456 = vmul.f32 %v199, %v357
        %v457 = vmul.f32 %v200, %v367
        %v458 = vmul.f32 %v201, %v377
        %v459 = vmul.f32 %v202, %v387
        %v460 = vmul.f32 %v203, %v397
        %v461 = vmul.f32 %v204, %v407
        %v462 = vmul.f32 %v205, %v417
        %v463 = vmul.f32 %v206, %v427
        %v464 = vmul.f32 %v207, %v437
        %v465 = vmul.f32 %v208, %v447
        %v466 = vpack.c.bf16 %v449, %v449
        %v467 = vpack.c.bf16 %v451, %v450
        %v468 = vpack.c.bf16 %v453, %v452
        %v469 = vpack.c.bf16 %v455, %v454
        %v470 = vpack.c.bf16 %v457, %v456
        %v471 = vpack.c.bf16 %v459, %v458
        %v472 = vpack.c.bf16 %v461, %v460
        %v473 = vpack.c.bf16 %v463, %v462
        %v474 = vpack.c.bf16 %v465, %v464
        %475 = vmatpush.bf16.xpose.msra.mxu0 %v474
        %476 = vmatpush.bf16.xpose.msra.mxu0 %v473
        %477 = vmatpush.bf16.xpose.msra.mxu0 %v472
        %478 = vmatpush.bf16.xpose.msra.mxu0 %v471
        %479 = vmatpush.bf16.xpose.msra.mxu0 %v470
        %480 = vmatpush.bf16.xpose.msra.mxu0 %v469
        %481 = vmatpush.bf16.xpose.msra.mxu0 %v468
        %482 = vmatpush.bf16.xpose.msra.mxu0 %v467
        %483 = vmatmul.bf16.gmra.mxu0 %v466
        %v484 = vpop.f32.mrf.mxu0
        %v485 = vadd.f32 0.0, %v484
        %v486 = vpop.f32.mrf.mxu0
        %487 = vdwg.mxu0
        %v488 = vlaneseq
        %v489 = vand.u32 %v488, 127
        %s490 = smul.u32 %s20, 128
        %v491 = vstv %s490
        %v492 = vadd.s32 %v489, %v491
        %493 = vset.pattern.permute.xlu0 0
        %494 = vperm.xlu0 %493, %v209
        %v495 = vpop.permute.xlu0 %494
        %vm496 = vcmp.eq.s32.totalorder %v492, %v495
        %v497 = vsel %vm496, 12.0, 0.0
        %v498 = vsub.f32 %v485, %v497
        %499 = vst [vmem:[%s190] sm:$0xff] %v498
        %s500 = sand.u32 %s96, 1
        %s501 = scalar_lea.sflag [#allocation4], %s500
        %s502 = sand.u32 %s96, 1
        %s503 = smul.addr %s502, 8
        %s504 = scalar_lea.vmem [#allocation5], %s503
        // Predicated region
        $region37: #{tpu_custom_call.1} parent=31 // pred_check
          %p505 = pneg %p106
        $region38: #{tpu_custom_call.1} parent=31 // pred_check_branch
          %507 = sbr.rel (%p505) target = $region40
        $region39: #{tpu_custom_call.1} parent=31 // pred_region
          %509 = vsyncadd %s501, 0
          %s510 = smul.addr %s20, 8
          %s511 = scalar_lea.hbm %s3, %s510
          %s513 = sshll.u32 %s504, 4
          %s514 = int_to_ptr.vmem [resolvable:$true] %s513
          %s515 = sshll.u32 %s511, 4
          %s516 = int_to_ptr.hbm [resolvable:$true] %s515
          %518 = dma.vmem_to_hbm [thread:$0]  %s514, 128, %s516, %s501
        $region40: #{tpu_custom_call.1} parent=31 // pred_fallthru
          _
      $region32: #{tpu_custom_call.1} parent=5 // pred_fallthru
        _
      %p519 = scmp.le.s32.totalorder 2, %s15
      // Predicated region
      $region41: #{tpu_custom_call.1} parent=5 // pred_check
        %p520 = pneg %p519
      $region42: #{tpu_custom_call.1} parent=5 // pred_check_branch
        %522 = sbr.rel (%p520) target = $region44
      $region43: #{tpu_custom_call.1} parent=5 // pred_region
        %s523 = ssub.s32 %s15, 2
        // Predicated region
        $region45: #{tpu_custom_call.1} parent=43 // pred_check
          %p524 = pneg %p112
        $region46: #{tpu_custom_call.1} parent=43 // pred_check_branch
          %526 = sbr.rel (%p524) target = $region48
        $region47: #{tpu_custom_call.1} parent=43 // pred_region
          %s527 = sand.u32 %s97, 1
          %s528 = scalar_lea.sflag [#allocation4], %s527
          %s529 = sand.u32 %s97, 1
          %s530 = smul.addr %s529, 8
          %s531 = scalar_lea.vmem [#allocation5], %s530
          %533 = dma.done %s528, 128
        $region48: #{tpu_custom_call.1} parent=43 // pred_fallthru
          _
      $region44: #{tpu_custom_call.1} parent=5 // pred_fallthru
        _
    $region6: #{tpu_custom_call.1} parent=1 // loop_footer
      %s19 = sadd.s32 1, %s15
    $region7: #{tpu_custom_call.1} parent=1 // loop_footer_branch
      %14 = sbr.rel target = $region3
    $region8: #{tpu_custom_call.1} parent=1 // loop_exit
      _
    %534 = vsyncpa [#allocation3], 1
    %s535 = scalar_lea.sflag [#allocation3], 1
    %536 = vsyncpa %s535, 1
    %537 = vsyncpa [#allocation4], 1
    %s538 = scalar_lea.sflag [#allocation4], 1
    %539 = vsyncpa %s538, 1

</llo_original>
